<compile_context>
chip_gen: v5e
topology: v5e:2x2
jax: 0.10.0
libtpu: 0.0.40
codegen_flags: <defaults>
</compile_context>

<pallas_src>
import functools

import numpy as np
import jax
import jax.numpy as jnp
from jax import lax
from jax.experimental import pallas as pl
from jax.experimental.pallas import tpu as pltpu


def srbw2_kernel(x_ref, masks_ref, w1_ref, b1_ref, w2_ref, b2_ref,
                 wblk_ref, bblk_ref, sap_ref, rs_ref, out_ref,
                 *, W, HW, bblk):
    f32 = jnp.float32
    bf16 = jnp.bfloat16
    N = x_ref.shape[1]                       # = bblk * HW (lane axis)
    Csa = out_ref.shape[0]

    x_bf = x_ref[...]                        # (C, N) bf16, lane-dense

    # Precomputed boundary masks (hoisted to the wrapper; repeat every HW cols).
    not_l = masks_ref[0:1, :]                # (1, N) f32
    not_r = masks_ref[1:2, :]
    not_t = masks_ref[2:3, :]
    not_b = masks_ref[3:4, :]

    # --- body: conv1x1 -> ReLU -> conv1x1 (bf16 MXU operands, f32 accumulation)
    h1 = jnp.dot(w1_ref[...], x_bf, preferred_element_type=f32) + b1_ref[...]
    h1 = jnp.maximum(h1, 0.0)
    h2 = jnp.dot(w2_ref[...], h1.astype(bf16), preferred_element_type=f32) + b2_ref[...]

    # --- im2col via lane rolls (XLU); two-stage dx-then-dy masks (8 mask muls).
    def im2col(a):                           # (Cin, N) f32 -> (9*Cin, N) f32
        left = pltpu.roll(a, shift=1, axis=1) * not_l         # dx = -1
        right = pltpu.roll(a, shift=N - 1, axis=1) * not_r    # dx = +1
        parts = []
        for v in (left, a, right):                            # dx = -1, 0, +1
            parts.append(pltpu.roll(v, shift=W, axis=1) * not_t)      # dy = -1
            parts.append(v)                                           # dy = 0
            parts.append(pltpu.roll(v, shift=N - W, axis=1) * not_b)  # dy = +1
        return jnp.concatenate(parts, axis=0)

    # --- fused 3x3 convs: body tail (Csa<-Csa) and residual (Csa<-C) in ONE dot.
    # wblk rows are pre-permuted (channel_shuffle) and x_scale is folded in.
    z = jnp.concatenate([im2col(h2), im2col(x_bf.astype(f32))], axis=0)  # (9*Csa+9*C, N)
    yr = jnp.dot(wblk_ref[...], z.astype(bf16), preferred_element_type=f32) + bblk_ref[...]
    y = yr[:Csa]                             # body output, already in shuffled order
    r = yr[Csa:]                             # residual conv output (x_scale folded)

    # --- sa_layer: per-image, per-channel stats over each HW lane segment.
    def seg_mean(a):
        if bblk == 1:
            return jnp.mean(a, axis=1, keepdims=True)
        parts = []
        for b in range(bblk):
            m = jnp.mean(a[:, b * HW:(b + 1) * HW], axis=1, keepdims=True)
            parts.append(jnp.broadcast_to(m, (a.shape[0], HW)))
        return jnp.concatenate(parts, axis=1)

    mu = seg_mean(y)                         # avg_pool mean == GroupNorm mean
    d = y - mu
    var = seg_mean(d * d)                    # two-pass variance (no cancellation)

    cw = sap_ref[:, 0:1]
    cb = sap_ref[:, 1:2]
    sw = sap_ref[:, 2:3]
    sb = sap_ref[:, 3:4]
    gnw = sap_ref[:, 4:5]
    gnb = sap_ref[:, 5:6]
    m0 = sap_ref[:, 6:7]                     # 1.0 -> channel-attn half, 0.0 -> GN half

    gn = gnw * d * lax.rsqrt(var + 1e-5) + gnb
    gate = jnp.where(m0 > 0.5, cw * mu + cb, sw * gn + sb)   # select BEFORE sigmoid
    sa = y * jax.nn.sigmoid(gate)            # single EUP sigmoid pass

    out_ref[...] = rs_ref[0] * sa + r


def _choose_bblk(B, HW, max_cols=4096):
    """Images per grid step: as large as the VMEM budget allows, but keep >= 2
    grid steps when the batch allows it (v7x has 2 TensorCores per chip)."""
    bb = max(1, min(B, max_cols // HW))
    while bb > 1 and (B // bb) < 2:
        bb -= 1
    while B % bb:
        bb -= 1
    return bb


def srbw2_pallas(x_nchw, p, bblk=None):
    B, C, H, W = x_nchw.shape
    HW = H * W
    Csa = C // 2
    if bblk is None:
        bblk = _choose_bblk(B, HW)
    assert B % bblk == 0
    N = bblk * HW
    grid = B // bblk

    # Lane-dense channels-first layout: one cheap XLA transpose, bf16 DMA.
    x_cn = jnp.transpose(x_nchw, (1, 0, 2, 3)).reshape(C, B * HW).astype(jnp.bfloat16)

    # Boundary masks for the 3x3 taps, computed once (pattern repeats per image).
    pos = jnp.arange(N, dtype=jnp.int32) % HW
    col = pos % W
    row = pos // W
    masks = jnp.stack([col > 0, col < W - 1, row > 0, row < H - 1]).astype(jnp.float32)

    kernel = functools.partial(srbw2_kernel, W=W, HW=HW, bblk=bblk)
    out = pl.pallas_call(
        kernel,
        out_shape=jax.ShapeDtypeStruct((Csa, B * HW), jnp.float32),
        grid_spec=pltpu.PrefetchScalarGridSpec(
            num_scalar_prefetch=0,
            grid=(grid,),
            in_specs=[
                pl.BlockSpec((C, N), lambda i: (0, i)),
                pl.BlockSpec(masks.shape, lambda i: (0, 0)),
                pl.BlockSpec(p["w1"].shape, lambda i: (0, 0)),
                pl.BlockSpec(p["b1"].shape, lambda i: (0, 0)),
                pl.BlockSpec(p["w2"].shape, lambda i: (0, 0)),
                pl.BlockSpec(p["b2"].shape, lambda i: (0, 0)),
                pl.BlockSpec(p["wblk"].shape, lambda i: (0, 0)),
                pl.BlockSpec(p["bblk"].shape, lambda i: (0, 0)),
                pl.BlockSpec(p["sap"].shape, lambda i: (0, 0)),
                pl.BlockSpec(memory_space=pltpu.MemorySpace.SMEM),
            ],
            out_specs=pl.BlockSpec((Csa, N), lambda i: (0, i)),
        ),
        compiler_params=pltpu.CompilerParams(dimension_semantics=("parallel",)),
    )(x_cn, masks, p["w1"], p["b1"], p["w2"], p["b2"], p["wblk"], p["bblk"],
      p["sap"], p["res_scale"])

    return jnp.transpose(out.reshape(Csa, B, H, W), (1, 0, 2, 3))


# ---------------- parameter construction (deterministic, in-script) ----------------

def init_params(key, C):
    Csa = C // 2
    groups = 4
    half = Csa // (2 * groups)
    ks = jax.random.split(key, 12)
    n = lambda k, s: 0.1 * jax.random.normal(k, s, jnp.float32)
    return dict(
        w1=n(ks[0], (2 * C, C)), b1=n(ks[1], (2 * C,)),          # Conv2d(C, 2C, 1)
        w2=n(ks[2], (Csa, 2 * C)), b2=n(ks[3], (Csa,)),          # Conv2d(2C, C/2, 1)
        w3=n(ks[4], (Csa, Csa, 3, 3)), b3=n(ks[5], (Csa,)),      # Conv2d(C/2, C/2, 3, pad=1)
        wr=n(ks[6], (Csa, C, 3, 3)), br=n(ks[7], (Csa,)),        # Conv2d(C, C/2, 3, pad=1)
        cweight=0.5 * jax.random.normal(ks[8], (half,), jnp.float32),
        cbias=1.0 + 0.1 * jax.random.normal(ks[9], (half,), jnp.float32),
        sweight=0.5 * jax.random.normal(ks[10], (half,), jnp.float32),
        sbias=1.0 + 0.1 * jax.random.normal(ks[11], (half,), jnp.float32),
        gnw=jnp.ones((half,), jnp.float32),                      # GroupNorm affine defaults
        gnb=jnp.zeros((half,), jnp.float32),
        res_scale=jnp.float32(0.8),                              # Scale(1) params (learnable)
        x_scale=jnp.float32(1.2),
    )


def pack_params(raw, C):
    groups = 4
    Csa = C // 2
    cg = Csa // groups
    half = cg // 2

    cweight = np.asarray(raw["cweight"], np.float32)
    cbias = np.asarray(raw["cbias"], np.float32)
    sweight = np.asarray(raw["sweight"], np.float32)
    sbias = np.asarray(raw["sbias"], np.float32)
    gnw = np.asarray(raw["gnw"], np.float32)
    gnb = np.asarray(raw["gnb"], np.float32)

    cw = np.zeros(Csa, np.float32); cb = np.zeros(Csa, np.float32)
    sw = np.zeros(Csa, np.float32); sb = np.zeros(Csa, np.float32)
    gw = np.zeros(Csa, np.float32); gb = np.zeros(Csa, np.float32)
    m0 = np.zeros(Csa, np.float32)
    for c in range(Csa):
        j = c % cg
        if j < half:                      # x_0 half: channel attention
            m0[c] = 1.0
            cw[c] = cweight[j]; cb[c] = cbias[j]
        else:                             # x_1 half: GroupNorm spatial attention
            sw[c] = sweight[j - half]; sb[c] = sbias[j - half]
            gw[c] = gnw[j - half]; gb[c] = gnb[j - half]
    sap = np.stack([cw, cb, sw, sb, gw, gb, m0, np.zeros(Csa, np.float32)], axis=1)

    # channel_shuffle(groups=2): shuffled[dst] = unshuffled[src[dst]]
    src = np.empty(Csa, np.int64)
    src[0::2] = np.arange(Csa // 2)
    src[1::2] = np.arange(Csa // 2) + Csa // 2
    sap = sap[src]                        # per-channel sa params in shuffled order

    def conv3x3_to_im2col(w):
        # tap order: dx-major, dy-minor -> matches srbw2_kernel.im2col
        o = np.asarray(w).shape[0]
        return np.transpose(np.asarray(w, np.float32), (0, 3, 2, 1)).reshape(o, -1)

    xs = np.float32(raw["x_scale"])
    w3f = conv3x3_to_im2col(raw["w3"])[src]                  # (Csa, 9*Csa), shuffled rows
    b3f = np.asarray(raw["b3"], np.float32)[src]
    wrf = conv3x3_to_im2col(raw["wr"]) * xs                  # (Csa, 9*C), x_scale folded
    brf = np.asarray(raw["br"], np.float32) * xs

    # Fused block-diagonal weight: one MXU dot produces [body 3x3 ; residual 3x3].
    wblk = np.zeros((2 * Csa, 9 * Csa + 9 * C), np.float32)
    wblk[:Csa, :9 * Csa] = w3f
    wblk[Csa:, 9 * Csa:] = wrf
    bblk = np.concatenate([b3f, brf]).reshape(2 * Csa, 1)

    bf16 = jnp.bfloat16
    return dict(
        w1=jnp.asarray(np.asarray(raw["w1"], np.float32), bf16),
        b1=jnp.asarray(np.asarray(raw["b1"], np.float32).reshape(-1, 1)),
        w2=jnp.asarray(np.asarray(raw["w2"], np.float32), bf16),
        b2=jnp.asarray(np.asarray(raw["b2"], np.float32).reshape(-1, 1)),
        wblk=jnp.asarray(wblk, bf16),
        bblk=jnp.asarray(bblk, jnp.float32),
        sap=jnp.asarray(sap, jnp.float32),
        res_scale=jnp.asarray(raw["res_scale"], jnp.float32).reshape(1),
    )


# ---------------- pure-JAX reference (mirrors the PyTorch module, NCHW, f32) ----------------

def srbw2_ref(x, raw, groups=4):
    B, C, H, W = x.shape
    Csa = C // 2
    hp = lax.Precision.HIGHEST
    h1 = jnp.einsum("bchw,oc->bohw", x, raw["w1"], precision=hp) + raw["b1"][None, :, None, None]
    h1 = jnp.maximum(h1, 0.0)
    h2 = jnp.einsum("bchw,oc->bohw", h1, raw["w2"], precision=hp) + raw["b2"][None, :, None, None]
    y = lax.conv_general_dilated(h2, raw["w3"], (1, 1), ((1, 1), (1, 1)),
                                 dimension_numbers=("NCHW", "OIHW", "NCHW"),
                                 precision=hp) + raw["b3"][None, :, None, None]
    # sa_layer on Csa channels
    cg = Csa // groups
    half = cg // 2
    yr = y.reshape(B * groups, cg, H, W)
    x0, x1 = yr[:, :half], yr[:, half:]
    xn = jnp.mean(x0, axis=(2, 3), keepdims=True)
    xn = raw["cweight"][None, :, None, None] * xn + raw["cbias"][None, :, None, None]
    xn = x0 * jax.nn.sigmoid(xn)
    mu = jnp.mean(x1, axis=(2, 3), keepdims=True)
    var = jnp.mean((x1 - mu) ** 2, axis=(2, 3), keepdims=True)
    gn = (x1 - mu) * lax.rsqrt(var + 1e-5)
    gn = raw["gnw"][None, :, None, None] * gn + raw["gnb"][None, :, None, None]
    xg = raw["sweight"][None, :, None, None] * gn + raw["sbias"][None, :, None, None]
    xg = x1 * jax.nn.sigmoid(xg)
    sa = jnp.concatenate([xn, xg], axis=1).reshape(B, Csa, H, W)
    sa = sa.reshape(B, 2, Csa // 2, H, W).transpose(0, 2, 1, 3, 4).reshape(B, Csa, H, W)
    # residual path
    r = lax.conv_general_dilated(x, raw["wr"], (1, 1), ((1, 1), (1, 1)),
                                 dimension_numbers=("NCHW", "OIHW", "NCHW"),
                                 precision=hp) + raw["br"][None, :, None, None]
    return raw["res_scale"] * sa + raw["x_scale"] * r


if __name__ == "__main__":
    key = jax.random.PRNGKey(0)
    B, C, H, W = 2, 16, 16, 16           # n_feats = 16 (smallest with (n_feats//2) % 8 == 0)
    kx, kp = jax.random.split(key)
    x = jax.random.normal(kx, (B, C, H, W), jnp.float32)

    raw = init_params(kp, C)
    packed = pack_params(raw, C)

    out = srbw2_pallas(x, packed)
    out = jax.block_until_ready(out)

    ref = srbw2_ref(x, raw)
    # bf16 MXU operands with f32 accumulation -> compare with bf16-level tolerance.
    np.testing.assert_allclose(np.asarray(out), np.asarray(ref), rtol=2e-2, atol=3e-2)
    print("KERNEL_OK")
</pallas_src>

<mosaic_0001>
module attributes {stable_mosaic.version = 11 : i64} {
  func.func @srbw2_kernel(%arg0: i32, %arg1: memref<16x256xbf16, #tpu.memory_space<vmem>>, %arg2: memref<4x256xf32, #tpu.memory_space<vmem>>, %arg3: memref<32x16xbf16, #tpu.memory_space<vmem>>, %arg4: memref<32x1xf32, #tpu.memory_space<vmem>>, %arg5: memref<8x32xbf16, #tpu.memory_space<vmem>>, %arg6: memref<8x1xf32, #tpu.memory_space<vmem>>, %arg7: memref<16x216xbf16, #tpu.memory_space<vmem>>, %arg8: memref<16x1xf32, #tpu.memory_space<vmem>>, %arg9: memref<8x8xf32, #tpu.memory_space<vmem>>, %arg10: memref<1xf32, #tpu.memory_space<smem>>, %arg11: memref<8x256xf32, #tpu.memory_space<vmem>>) attributes {dimension_semantics = [#tpu.dimension_semantics<parallel>], iteration_bounds = array<i64: 2>, scalar_prefetch = 0 : i64, scratch_operands = 0 : i64, tpu.core_type = #tpu.core_type<tc>, window_params = [{transform_indices = @transform_0, window_bounds = array<i64: 16, 256>}, {pipeline_mode = #tpu.pipeline_mode<synchronous>, transform_indices = @transform_1, window_bounds = array<i64: 4, 256>}, {pipeline_mode = #tpu.pipeline_mode<synchronous>, transform_indices = @transform_2, window_bounds = array<i64: 32, 16>}, {pipeline_mode = #tpu.pipeline_mode<synchronous>, transform_indices = @transform_3, window_bounds = array<i64: 32, 1>}, {pipeline_mode = #tpu.pipeline_mode<synchronous>, transform_indices = @transform_4, window_bounds = array<i64: 8, 32>}, {pipeline_mode = #tpu.pipeline_mode<synchronous>, transform_indices = @transform_5, window_bounds = array<i64: 8, 1>}, {pipeline_mode = #tpu.pipeline_mode<synchronous>, transform_indices = @transform_6, window_bounds = array<i64: 16, 216>}, {pipeline_mode = #tpu.pipeline_mode<synchronous>, transform_indices = @transform_7, window_bounds = array<i64: 16, 1>}, {pipeline_mode = #tpu.pipeline_mode<synchronous>, transform_indices = @transform_8, window_bounds = array<i64: 8, 8>}, {transform_indices = @transform_9, window_bounds = array<i64: 1>}, {transform_indices = @transform_10, window_bounds = array<i64: 8, 256>}]} {
    %c0 = arith.constant 0 : index
    %c0_0 = arith.constant 0 : index
    %0 = vector.load %arg1[%c0, %c0_0] : memref<16x256xbf16, #tpu.memory_space<vmem>>, vector<16x256xbf16>
    %c0_1 = arith.constant 0 : index
    %c0_2 = arith.constant 0 : index
    %1 = vector.load %arg2[%c0_1, %c0_2] : memref<4x256xf32, #tpu.memory_space<vmem>>, vector<1x256xf32>
    %c1 = arith.constant 1 : index
    %c0_3 = arith.constant 0 : index
    %2 = vector.load %arg2[%c1, %c0_3] : memref<4x256xf32, #tpu.memory_space<vmem>>, vector<1x256xf32>
    %c2 = arith.constant 2 : index
    %c0_4 = arith.constant 0 : index
    %3 = vector.load %arg2[%c2, %c0_4] : memref<4x256xf32, #tpu.memory_space<vmem>>, vector<1x256xf32>
    %c3 = arith.constant 3 : index
    %c0_5 = arith.constant 0 : index
    %4 = vector.load %arg2[%c3, %c0_5] : memref<4x256xf32, #tpu.memory_space<vmem>>, vector<1x256xf32>
    %c0_6 = arith.constant 0 : index
    %c0_7 = arith.constant 0 : index
    %5 = vector.load %arg3[%c0_6, %c0_7] : memref<32x16xbf16, #tpu.memory_space<vmem>>, vector<32x16xbf16>
    %cst = arith.constant dense<0.000000e+00> : vector<32x256xf32>
    %6 = tpu.matmul %5, %0, %cst {dimension_numbers = #tpu.dot_dimension_numbers<[1], [0], [0], [1], [0, 0, 1, 1], [], []>} : vector<32x16xbf16>, vector<16x256xbf16>, vector<32x256xf32> -> vector<32x256xf32>
    %c0_8 = arith.constant 0 : index
    %c0_9 = arith.constant 0 : index
    %7 = vector.load %arg4[%c0_8, %c0_9] : memref<32x1xf32, #tpu.memory_space<vmem>>, vector<32x1xf32>
    %8 = vector.broadcast %7 : vector<32x1xf32> to vector<32x256xf32>
    %9 = arith.addf %6, %8 : vector<32x256xf32>
    %cst_10 = arith.constant 0.000000e+00 : f32
    %10 = vector.broadcast %cst_10 : f32 to vector<32x256xf32>
    %11 = arith.maximumf %9, %10 : vector<32x256xf32>
    %c0_11 = arith.constant 0 : index
    %c0_12 = arith.constant 0 : index
    %12 = vector.load %arg5[%c0_11, %c0_12] : memref<8x32xbf16, #tpu.memory_space<vmem>>, vector<8x32xbf16>
    %13 = arith.truncf %11 : vector<32x256xf32> to vector<32x256xbf16>
    %cst_13 = arith.constant dense<0.000000e+00> : vector<8x256xf32>
    %14 = tpu.matmul %12, %13, %cst_13 {dimension_numbers = #tpu.dot_dimension_numbers<[1], [0], [0], [1], [0, 0, 1, 1], [], []>} : vector<8x32xbf16>, vector<32x256xbf16>, vector<8x256xf32> -> vector<8x256xf32>
    %c0_14 = arith.constant 0 : index
    %c0_15 = arith.constant 0 : index
    %15 = vector.load %arg6[%c0_14, %c0_15] : memref<8x1xf32, #tpu.memory_space<vmem>>, vector<8x1xf32>
    %16 = vector.broadcast %15 : vector<8x1xf32> to vector<8x256xf32>
    %17 = arith.addf %14, %16 : vector<8x256xf32>
    %c1_i32 = arith.constant 1 : i32
    %18 = tpu.dynamic_rotate %17 by %c1_i32 dim 1 : vector<8x256xf32>, i32 -> vector<8x256xf32>
    %19 = vector.broadcast %1 : vector<1x256xf32> to vector<8x256xf32>
    %20 = arith.mulf %18, %19 : vector<8x256xf32>
    %c255_i32 = arith.constant 255 : i32
    %21 = tpu.dynamic_rotate %17 by %c255_i32 dim 1 : vector<8x256xf32>, i32 -> vector<8x256xf32>
    %22 = vector.broadcast %2 : vector<1x256xf32> to vector<8x256xf32>
    %23 = arith.mulf %21, %22 : vector<8x256xf32>
    %c16_i32 = arith.constant 16 : i32
    %24 = tpu.dynamic_rotate %20 by %c16_i32 dim 1 : vector<8x256xf32>, i32 -> vector<8x256xf32>
    %25 = vector.broadcast %3 : vector<1x256xf32> to vector<8x256xf32>
    %26 = arith.mulf %24, %25 : vector<8x256xf32>
    %c240_i32 = arith.constant 240 : i32
    %27 = tpu.dynamic_rotate %20 by %c240_i32 dim 1 : vector<8x256xf32>, i32 -> vector<8x256xf32>
    %28 = vector.broadcast %4 : vector<1x256xf32> to vector<8x256xf32>
    %29 = arith.mulf %27, %28 : vector<8x256xf32>
    %c16_i32_16 = arith.constant 16 : i32
    %30 = tpu.dynamic_rotate %17 by %c16_i32_16 dim 1 : vector<8x256xf32>, i32 -> vector<8x256xf32>
    %31 = vector.broadcast %3 : vector<1x256xf32> to vector<8x256xf32>
    %32 = arith.mulf %30, %31 : vector<8x256xf32>
    %c240_i32_17 = arith.constant 240 : i32
    %33 = tpu.dynamic_rotate %17 by %c240_i32_17 dim 1 : vector<8x256xf32>, i32 -> vector<8x256xf32>
    %34 = vector.broadcast %4 : vector<1x256xf32> to vector<8x256xf32>
    %35 = arith.mulf %33, %34 : vector<8x256xf32>
    %c16_i32_18 = arith.constant 16 : i32
    %36 = tpu.dynamic_rotate %23 by %c16_i32_18 dim 1 : vector<8x256xf32>, i32 -> vector<8x256xf32>
    %37 = vector.broadcast %3 : vector<1x256xf32> to vector<8x256xf32>
    %38 = arith.mulf %36, %37 : vector<8x256xf32>
    %c240_i32_19 = arith.constant 240 : i32
    %39 = tpu.dynamic_rotate %23 by %c240_i32_19 dim 1 : vector<8x256xf32>, i32 -> vector<8x256xf32>
    %40 = vector.broadcast %4 : vector<1x256xf32> to vector<8x256xf32>
    %41 = arith.mulf %39, %40 : vector<8x256xf32>
    %42 = tpu.concatenate %26, %20, %29, %32, %17, %35, %38, %23, %41 in 0 : vector<8x256xf32>, vector<8x256xf32>, vector<8x256xf32>, vector<8x256xf32>, vector<8x256xf32>, vector<8x256xf32>, vector<8x256xf32>, vector<8x256xf32>, vector<8x256xf32> -> vector<72x256xf32>
    %43 = arith.extf %0 : vector<16x256xbf16> to vector<16x256xf32>
    %c1_i32_20 = arith.constant 1 : i32
    %44 = tpu.dynamic_rotate %43 by %c1_i32_20 dim 1 : vector<16x256xf32>, i32 -> vector<16x256xf32>
    %45 = vector.broadcast %1 : vector<1x256xf32> to vector<16x256xf32>
    %46 = arith.mulf %44, %45 : vector<16x256xf32>
    %c255_i32_21 = arith.constant 255 : i32
    %47 = tpu.dynamic_rotate %43 by %c255_i32_21 dim 1 : vector<16x256xf32>, i32 -> vector<16x256xf32>
    %48 = vector.broadcast %2 : vector<1x256xf32> to vector<16x256xf32>
    %49 = arith.mulf %47, %48 : vector<16x256xf32>
    %c16_i32_22 = arith.constant 16 : i32
    %50 = tpu.dynamic_rotate %46 by %c16_i32_22 dim 1 : vector<16x256xf32>, i32 -> vector<16x256xf32>
    %51 = vector.broadcast %3 : vector<1x256xf32> to vector<16x256xf32>
    %52 = arith.mulf %50, %51 : vector<16x256xf32>
    %c240_i32_23 = arith.constant 240 : i32
    %53 = tpu.dynamic_rotate %46 by %c240_i32_23 dim 1 : vector<16x256xf32>, i32 -> vector<16x256xf32>
    %54 = vector.broadcast %4 : vector<1x256xf32> to vector<16x256xf32>
    %55 = arith.mulf %53, %54 : vector<16x256xf32>
    %c16_i32_24 = arith.constant 16 : i32
    %56 = tpu.dynamic_rotate %43 by %c16_i32_24 dim 1 : vector<16x256xf32>, i32 -> vector<16x256xf32>
    %57 = vector.broadcast %3 : vector<1x256xf32> to vector<16x256xf32>
    %58 = arith.mulf %56, %57 : vector<16x256xf32>
    %c240_i32_25 = arith.constant 240 : i32
    %59 = tpu.dynamic_rotate %43 by %c240_i32_25 dim 1 : vector<16x256xf32>, i32 -> vector<16x256xf32>
    %60 = vector.broadcast %4 : vector<1x256xf32> to vector<16x256xf32>
    %61 = arith.mulf %59, %60 : vector<16x256xf32>
    %c16_i32_26 = arith.constant 16 : i32
    %62 = tpu.dynamic_rotate %49 by %c16_i32_26 dim 1 : vector<16x256xf32>, i32 -> vector<16x256xf32>
    %63 = vector.broadcast %3 : vector<1x256xf32> to vector<16x256xf32>
    %64 = arith.mulf %62, %63 : vector<16x256xf32>
    %c240_i32_27 = arith.constant 240 : i32
    %65 = tpu.dynamic_rotate %49 by %c240_i32_27 dim 1 : vector<16x256xf32>, i32 -> vector<16x256xf32>
    %66 = vector.broadcast %4 : vector<1x256xf32> to vector<16x256xf32>
    %67 = arith.mulf %65, %66 : vector<16x256xf32>
    %68 = tpu.concatenate %52, %46, %55, %58, %43, %61, %64, %49, %67 in 0 : vector<16x256xf32>, vector<16x256xf32>, vector<16x256xf32>, vector<16x256xf32>, vector<16x256xf32>, vector<16x256xf32>, vector<16x256xf32>, vector<16x256xf32>, vector<16x256xf32> -> vector<144x256xf32>
    %69 = tpu.concatenate %42, %68 in 0 : vector<72x256xf32>, vector<144x256xf32> -> vector<216x256xf32>
    %c0_28 = arith.constant 0 : index
    %c0_29 = arith.constant 0 : index
    %70 = vector.load %arg7[%c0_28, %c0_29] : memref<16x216xbf16, #tpu.memory_space<vmem>>, vector<16x216xbf16>
    %71 = arith.truncf %69 : vector<216x256xf32> to vector<216x256xbf16>
    %cst_30 = arith.constant dense<0.000000e+00> : vector<16x256xf32>
    %72 = tpu.matmul %70, %71, %cst_30 {dimension_numbers = #tpu.dot_dimension_numbers<[1], [0], [0], [1], [0, 0, 1, 1], [], []>} : vector<16x216xbf16>, vector<216x256xbf16>, vector<16x256xf32> -> vector<16x256xf32>
    %c0_31 = arith.constant 0 : index
    %c0_32 = arith.constant 0 : index
    %73 = vector.load %arg8[%c0_31, %c0_32] : memref<16x1xf32, #tpu.memory_space<vmem>>, vector<16x1xf32>
    %74 = vector.broadcast %73 : vector<16x1xf32> to vector<16x256xf32>
    %75 = arith.addf %72, %74 : vector<16x256xf32>
    %76 = vector.extract_strided_slice %75 {offsets = [0, 0], sizes = [8, 256], strides = [1, 1]} : vector<16x256xf32> to vector<8x256xf32>
    %77 = vector.extract_strided_slice %75 {offsets = [8, 0], sizes = [8, 256], strides = [1, 1]} : vector<16x256xf32> to vector<8x256xf32>
    %cst_33 = arith.constant dense<0.000000e+00> : vector<8xf32>
    %78 = vector.multi_reduction <add>, %76, %cst_33 [1] : vector<8x256xf32> to vector<8xf32>
    %79 = vector.shape_cast %78 : vector<8xf32> to vector<8x1xf32>
    %cst_34 = arith.constant 2.560000e+02 : f32
    %80 = vector.broadcast %cst_34 : f32 to vector<8x1xf32>
    %81 = arith.divf %79, %80 : vector<8x1xf32>
    %82 = vector.broadcast %81 : vector<8x1xf32> to vector<8x256xf32>
    %83 = arith.subf %76, %82 : vector<8x256xf32>
    %84 = arith.mulf %83, %83 : vector<8x256xf32>
    %cst_35 = arith.constant dense<0.000000e+00> : vector<8xf32>
    %85 = vector.multi_reduction <add>, %84, %cst_35 [1] : vector<8x256xf32> to vector<8xf32>
    %86 = vector.shape_cast %85 : vector<8xf32> to vector<8x1xf32>
    %cst_36 = arith.constant 2.560000e+02 : f32
    %87 = vector.broadcast %cst_36 : f32 to vector<8x1xf32>
    %88 = arith.divf %86, %87 : vector<8x1xf32>
    %c0_37 = arith.constant 0 : index
    %c0_38 = arith.constant 0 : index
    %89 = vector.load %arg9[%c0_37, %c0_38] : memref<8x8xf32, #tpu.memory_space<vmem>>, vector<8x1xf32>
    %c0_39 = arith.constant 0 : index
    %c1_40 = arith.constant 1 : index
    %90 = vector.load %arg9[%c0_39, %c1_40] : memref<8x8xf32, #tpu.memory_space<vmem>>, vector<8x1xf32>
    %c0_41 = arith.constant 0 : index
    %c2_42 = arith.constant 2 : index
    %91 = vector.load %arg9[%c0_41, %c2_42] : memref<8x8xf32, #tpu.memory_space<vmem>>, vector<8x1xf32>
    %c0_43 = arith.constant 0 : index
    %c3_44 = arith.constant 3 : index
    %92 = vector.load %arg9[%c0_43, %c3_44] : memref<8x8xf32, #tpu.memory_space<vmem>>, vector<8x1xf32>
    %c0_45 = arith.constant 0 : index
    %c4 = arith.constant 4 : index
    %93 = vector.load %arg9[%c0_45, %c4] : memref<8x8xf32, #tpu.memory_space<vmem>>, vector<8x1xf32>
    %c0_46 = arith.constant 0 : index
    %c5 = arith.constant 5 : index
    %94 = vector.load %arg9[%c0_46, %c5] : memref<8x8xf32, #tpu.memory_space<vmem>>, vector<8x1xf32>
    %c0_47 = arith.constant 0 : index
    %c6 = arith.constant 6 : index
    %95 = vector.load %arg9[%c0_47, %c6] : memref<8x8xf32, #tpu.memory_space<vmem>>, vector<8x1xf32>
    %96 = vector.broadcast %93 : vector<8x1xf32> to vector<8x256xf32>
    %97 = arith.mulf %96, %83 : vector<8x256xf32>
    %cst_48 = arith.constant 9.99999974E-6 : f32
    %98 = vector.broadcast %cst_48 : f32 to vector<8x1xf32>
    %99 = arith.addf %88, %98 : vector<8x1xf32>
    %100 = math.rsqrt %99 : vector<8x1xf32>
    %101 = vector.broadcast %100 : vector<8x1xf32> to vector<8x256xf32>
    %102 = arith.mulf %97, %101 : vector<8x256xf32>
    %103 = vector.broadcast %94 : vector<8x1xf32> to vector<8x256xf32>
    %104 = arith.addf %102, %103 : vector<8x256xf32>
    %cst_49 = arith.constant 5.000000e-01 : f32
    %105 = vector.broadcast %cst_49 : f32 to vector<8x1xf32>
    %106 = arith.cmpf ogt, %95, %105 : vector<8x1xf32>
    %107 = arith.mulf %89, %81 : vector<8x1xf32>
    %108 = arith.addf %107, %90 : vector<8x1xf32>
    %109 = vector.broadcast %91 : vector<8x1xf32> to vector<8x256xf32>
    %110 = arith.mulf %109, %104 : vector<8x256xf32>
    %111 = vector.broadcast %92 : vector<8x1xf32> to vector<8x256xf32>
    %112 = arith.addf %110, %111 : vector<8x256xf32>
    %113 = vector.shape_cast %106 : vector<8x1xi1> to vector<8x1xi1>
    %114 = vector.broadcast %113 : vector<8x1xi1> to vector<8x256xi1>
    %115 = vector.shape_cast %108 : vector<8x1xf32> to vector<8x1xf32>
    %116 = vector.broadcast %115 : vector<8x1xf32> to vector<8x256xf32>
    %117 = arith.select %114, %116, %112 : vector<8x256xi1>, vector<8x256xf32>
    %118 = arith.negf %117 : vector<8x256xf32>
    %119 = math.exp %118 : vector<8x256xf32>
    %cst_50 = arith.constant 1.000000e+00 : f32
    %120 = vector.broadcast %cst_50 : f32 to vector<8x256xf32>
    %121 = arith.addf %120, %119 : vector<8x256xf32>
    %122 = arith.divf %120, %121 : vector<8x256xf32>
    %123 = arith.mulf %76, %122 : vector<8x256xf32>
    %c0_51 = arith.constant 0 : index
    %124 = memref.load %arg10[%c0_51] : memref<1xf32, #tpu.memory_space<smem>>
    %125 = vector.broadcast %124 : f32 to vector<8x256xf32>
    %126 = arith.mulf %125, %123 : vector<8x256xf32>
    %127 = arith.addf %126, %77 : vector<8x256xf32>
    %c0_52 = arith.constant 0 : index
    %c0_53 = arith.constant 0 : index
    %128 = vector.load %arg11[%c0_52, %c0_53] : memref<8x256xf32, #tpu.memory_space<vmem>>, vector<8x256xf32>
    tpu.vector_store %arg11[%c0_52, %c0_53], %127 {strides = array<i32>} : memref<8x256xf32, #tpu.memory_space<vmem>>, vector<8x256xf32>,
    return
  }
  func.func @transform_0(%arg0: i32) -> (i32, i32) {
    %c0_i32 = arith.constant 0 : i32
    %c0_i32_0 = arith.constant 0 : i32
    return %c0_i32, %arg0 : i32, i32
  }
  func.func @transform_1(%arg0: i32) -> (i32, i32) {
    %c0_i32 = arith.constant 0 : i32
    %c0_i32_0 = arith.constant 0 : i32
    %c0_i32_1 = arith.constant 0 : i32
    return %c0_i32, %c0_i32_0 : i32, i32
  }
  func.func @transform_2(%arg0: i32) -> (i32, i32) {
    %c0_i32 = arith.constant 0 : i32
    %c0_i32_0 = arith.constant 0 : i32
    %c0_i32_1 = arith.constant 0 : i32
    return %c0_i32, %c0_i32_0 : i32, i32
  }
  func.func @transform_3(%arg0: i32) -> (i32, i32) {
    %c0_i32 = arith.constant 0 : i32
    %c0_i32_0 = arith.constant 0 : i32
    %c0_i32_1 = arith.constant 0 : i32
    return %c0_i32, %c0_i32_0 : i32, i32
  }
  func.func @transform_4(%arg0: i32) -> (i32, i32) {
    %c0_i32 = arith.constant 0 : i32
    %c0_i32_0 = arith.constant 0 : i32
    %c0_i32_1 = arith.constant 0 : i32
    return %c0_i32, %c0_i32_0 : i32, i32
  }
  func.func @transform_5(%arg0: i32) -> (i32, i32) {
    %c0_i32 = arith.constant 0 : i32
    %c0_i32_0 = arith.constant 0 : i32
    %c0_i32_1 = arith.constant 0 : i32
    return %c0_i32, %c0_i32_0 : i32, i32
  }
  func.func @transform_6(%arg0: i32) -> (i32, i32) {
    %c0_i32 = arith.constant 0 : i32
    %c0_i32_0 = arith.constant 0 : i32
    %c0_i32_1 = arith.constant 0 : i32
    return %c0_i32, %c0_i32_0 : i32, i32
  }
  func.func @transform_7(%arg0: i32) -> (i32, i32) {
    %c0_i32 = arith.constant 0 : i32
    %c0_i32_0 = arith.constant 0 : i32
    %c0_i32_1 = arith.constant 0 : i32
    return %c0_i32, %c0_i32_0 : i32, i32
  }
  func.func @transform_8(%arg0: i32) -> (i32, i32) {
    %c0_i32 = arith.constant 0 : i32
    %c0_i32_0 = arith.constant 0 : i32
    %c0_i32_1 = arith.constant 0 : i32
    return %c0_i32, %c0_i32_0 : i32, i32
  }
  func.func @transform_9(%arg0: i32) -> i32 {
    %c0_i32 = arith.constant 0 : i32
    %c0_i32_0 = arith.constant 0 : i32
    return %c0_i32 : i32
  }
  func.func @transform_10(%arg0: i32) -> (i32, i32) {
    %c0_i32 = arith.constant 0 : i32
    %c0_i32_0 = arith.constant 0 : i32
    return %c0_i32, %arg0 : i32, i32
  }
}

</mosaic_0001>

<llo_original>
// kernel: tpu_custom_call.1
$region0: #{tpu_custom_call.1}
  #allocation0 [shape = 'u32[]', space=smem, size = 0x4, offset = 0x4, fixed_abs, tag = 'smem constant byte address 0x4 - core index']
  #allocation1 [shape = 'u32[72,128]{1,0:T(1,128)}', space=vmem, size = 0x9000, scoped, tag = 'internal scratch']
  #allocation2 [shape = 'f32[1]{0:T(128)S(6)}', space=smem, size = 0x200, scoped, tag = 'scoped memory for tpu_custom_call.1']
  %s0 = inlined_call_operand.vmem [shape: bf16[16,512], index: 0, kind: input, shape index: {}]
  %s1 = inlined_call_operand.vmem [shape: f32[4,256], index: 1, kind: input, shape index: {}]
  %s2 = inlined_call_operand.vmem [shape: bf16[32,16], index: 2, kind: input, shape index: {}]
  %s3 = inlined_call_operand.vmem [shape: f32[32,1], index: 3, kind: input, shape index: {}]
  %s4 = inlined_call_operand.vmem [shape: bf16[8,32], index: 4, kind: input, shape index: {}]
  %s5 = inlined_call_operand.vmem [shape: f32[8,1], index: 5, kind: input, shape index: {}]
  %s6 = inlined_call_operand.vmem [shape: bf16[16,216], index: 6, kind: input, shape index: {}]
  %s7 = inlined_call_operand.vmem [shape: f32[16,1], index: 7, kind: input, shape index: {}]
  %s8 = inlined_call_operand.vmem [shape: f32[8,8], index: 8, kind: input, shape index: {}]
  %s9 = inlined_call_operand.<no memory space> [shape: f32[1], index: 9, kind: input, shape index: {}]
  %s10 = inlined_call_operand.hbm [shape: f32[8,512], index: 10, kind: output, shape index: {}]
  %s11 = sld [smem:[#allocation0]]
  $region111: #{tpu_custom_call.1} parent=0
    _
  %s13 = ssub.s32 1, %s11
  %s14 = scalar_select 0, %s13, %s11
  %15 = sst [smem:[#allocation2]] %s9
  $region1: #{tpu_custom_call.1} parent=0
    #allocation3 [shape = 'u8[16384]{0}', space=vmem, size = 0x4000, scoped, tag = 'input window, operand 0']
    #allocation4 [shape = 'u8[16384]{0}', space=vmem, size = 0x4000, scoped, tag = 'output window, operand 0']
    #allocation5 [shape = 's32[2]{0}', space=sflag, size = 0x8, scoped, tag = 'scoped memory for tpu_custom_call.1']
    %16 = vsyncpa [#allocation5], 0
    %s17 = scalar_lea.sflag [#allocation5], 1
    %18 = vsyncpa %s17, 0
    loop: start=0, step=1, limit=4
    $region2: #{tpu_custom_call.1} parent=1 // loop_pre_header
      _
    $region3: #{tpu_custom_call.1} parent=1 // loop_header
      %s20 = sphi 0, %s24
      %p21 = scmp.ge.s32.totalorder %s20, 4
      %s30 = sphi 0, %s32
      %s33 = sphi 0, %s30
      %s34 = sphi 0, %s33
      %s50 = sphi 0, %s34
      %s54 = sphi 0, %s54
      %s56 = sphi 0, %s54
      %s57 = sphi 0, %s56
      %s71 = sphi 0, %s57
      %s75 = sphi 0, %s75
      %s77 = sphi 0, %s75
      %s78 = sphi 0, %s77
      %s92 = sphi 0, %s78
      %s96 = sphi 0, %s96
      %s98 = sphi 0, %s96
      %s99 = sphi 0, %s98
      %s113 = sphi 0, %s99
      %s117 = sphi 0, %s117
      %s119 = sphi 0, %s117
      %s120 = sphi 0, %s119
      %s134 = sphi 0, %s120
      %s138 = sphi 0, %s138
      %s140 = sphi 0, %s138
      %s141 = sphi 0, %s140
      %s155 = sphi 0, %s141
      %s159 = sphi 0, %s159
      %s161 = sphi 0, %s159
      %s162 = sphi 0, %s161
      %s176 = sphi 0, %s162
      %s180 = sphi 0, %s180
      %s182 = sphi 0, %s180
      %s183 = sphi 0, %s182
      %s197 = sphi 0, %s183
      %s201 = sphi 0, %s201
      %s203 = sphi 0, %s201
      %s204 = sphi 0, %s203
      %s218 = sphi 0, %s204
      %s222 = sphi 0, %s222
      %s224 = sphi 0, %s222
      %s225 = sphi 0, %s224
      %s239 = sphi 0, %s225
      %s245 = sphi 0, %s247
      %s248 = sphi 0, %s245
      %s249 = sphi 0, %s248
      %s265 = sphi 0, %s249
    $region4: #{tpu_custom_call.1} parent=1 // loop_header_branch
      %23 = sbr.rel (%p21) target = $region8
    $region5: #{tpu_custom_call.1} parent=1 // loop_body
      %s25 = ssub.s32 %s20, 1
      %s26 = ssub.s32 %s20, 2
      %s27 = sadd.s32 %s20, 1
      %s28 = ssub.s32 %s20, %s27
      %p29 = scmp.eq.s32.totalorder %s28, 0
      %s31 = sadd.s32 %s30, 1
      %s32 = scalar_select %p29, %s30, %s31
      %p35 = pneg %p29
      %p36 = scmp.eq.s32.totalorder %s20, 1
      %p37 = por %p35, %p36
      %p38 = scmp.ne.s32.totalorder %s30, %s33
      %p39 = scmp.eq.s32.totalorder %s20, 0
      %p40 = por %p38, %p39
      %p41 = scmp.ne.s32.totalorder %s30, %s33
      %p42 = scmp.eq.s32.totalorder %s25, 1
      %p43 = por %p41, %p42
      %p44 = scmp.ne.s32.totalorder %s33, %s34
      %p45 = scmp.eq.s32.totalorder %s25, 0
      %p46 = por %p44, %p45
      %p47 = scmp.ne.s32.totalorder %s33, %s34
      %p48 = scmp.eq.s32.totalorder %s26, 1
      %p49 = por %p47, %p48
      %p51 = scmp.ne.s32.totalorder %s34, %s50
      %p52 = scmp.eq.s32.totalorder %s26, 0
      %p53 = por %p51, %p52
      %s55 = sadd.s32 %s54, 1
      %p58 = scmp.eq.s32.totalorder %s20, 1
      %p59 = scmp.ne.s32.totalorder %s54, %s56
      %p60 = scmp.eq.s32.totalorder %s20, 0
      %p61 = por %p59, %p60
      %p62 = scmp.ne.s32.totalorder %s54, %s56
      %p63 = scmp.eq.s32.totalorder %s25, 1
      %p64 = por %p62, %p63
      %p65 = scmp.ne.s32.totalorder %s56, %s57
      %p66 = scmp.eq.s32.totalorder %s25, 0
      %p67 = por %p65, %p66
      %p68 = scmp.ne.s32.totalorder %s56, %s57
      %p69 = scmp.eq.s32.totalorder %s26, 1
      %p70 = por %p68, %p69
      %p72 = scmp.ne.s32.totalorder %s57, %s71
      %p73 = scmp.eq.s32.totalorder %s26, 0
      %p74 = por %p72, %p73
      %s76 = sadd.s32 %s75, 1
      %p79 = scmp.eq.s32.totalorder %s20, 1
      %p80 = scmp.ne.s32.totalorder %s75, %s77
      %p81 = scmp.eq.s32.totalorder %s20, 0
      %p82 = por %p80, %p81
      %p83 = scmp.ne.s32.totalorder %s75, %s77
      %p84 = scmp.eq.s32.totalorder %s25, 1
      %p85 = por %p83, %p84
      %p86 = scmp.ne.s32.totalorder %s77, %s78
      %p87 = scmp.eq.s32.totalorder %s25, 0
      %p88 = por %p86, %p87
      %p89 = scmp.ne.s32.totalorder %s77, %s78
      %p90 = scmp.eq.s32.totalorder %s26, 1
      %p91 = por %p89, %p90
      %p93 = scmp.ne.s32.totalorder %s78, %s92
      %p94 = scmp.eq.s32.totalorder %s26, 0
      %p95 = por %p93, %p94
      %s97 = sadd.s32 %s96, 1
      %p100 = scmp.eq.s32.totalorder %s20, 1
      %p101 = scmp.ne.s32.totalorder %s96, %s98
      %p102 = scmp.eq.s32.totalorder %s20, 0
      %p103 = por %p101, %p102
      %p104 = scmp.ne.s32.totalorder %s96, %s98
      %p105 = scmp.eq.s32.totalorder %s25, 1
      %p106 = por %p104, %p105
      %p107 = scmp.ne.s32.totalorder %s98, %s99
      %p108 = scmp.eq.s32.totalorder %s25, 0
      %p109 = por %p107, %p108
      %p110 = scmp.ne.s32.totalorder %s98, %s99
      %p111 = scmp.eq.s32.totalorder %s26, 1
      %p112 = por %p110, %p111
      %p114 = scmp.ne.s32.totalorder %s99, %s113
      %p115 = scmp.eq.s32.totalorder %s26, 0
      %p116 = por %p114, %p115
      %s118 = sadd.s32 %s117, 1
      %p121 = scmp.eq.s32.totalorder %s20, 1
      %p122 = scmp.ne.s32.totalorder %s117, %s119
      %p123 = scmp.eq.s32.totalorder %s20, 0
      %p124 = por %p122, %p123
      %p125 = scmp.ne.s32.totalorder %s117, %s119
      %p126 = scmp.eq.s32.totalorder %s25, 1
      %p127 = por %p125, %p126
      %p128 = scmp.ne.s32.totalorder %s119, %s120
      %p129 = scmp.eq.s32.totalorder %s25, 0
      %p130 = por %p128, %p129
      %p131 = scmp.ne.s32.totalorder %s119, %s120
      %p132 = scmp.eq.s32.totalorder %s26, 1
      %p133 = por %p131, %p132
      %p135 = scmp.ne.s32.totalorder %s120, %s134
      %p136 = scmp.eq.s32.totalorder %s26, 0
      %p137 = por %p135, %p136
      %s139 = sadd.s32 %s138, 1
      %p142 = scmp.eq.s32.totalorder %s20, 1
      %p143 = scmp.ne.s32.totalorder %s138, %s140
      %p144 = scmp.eq.s32.totalorder %s20, 0
      %p145 = por %p143, %p144
      %p146 = scmp.ne.s32.totalorder %s138, %s140
      %p147 = scmp.eq.s32.totalorder %s25, 1
      %p148 = por %p146, %p147
      %p149 = scmp.ne.s32.totalorder %s140, %s141
      %p150 = scmp.eq.s32.totalorder %s25, 0
      %p151 = por %p149, %p150
      %p152 = scmp.ne.s32.totalorder %s140, %s141
      %p153 = scmp.eq.s32.totalorder %s26, 1
      %p154 = por %p152, %p153
      %p156 = scmp.ne.s32.totalorder %s141, %s155
      %p157 = scmp.eq.s32.totalorder %s26, 0
      %p158 = por %p156, %p157
      %s160 = sadd.s32 %s159, 1
      %p163 = scmp.eq.s32.totalorder %s20, 1
      %p164 = scmp.ne.s32.totalorder %s159, %s161
      %p165 = scmp.eq.s32.totalorder %s20, 0
      %p166 = por %p164, %p165
      %p167 = scmp.ne.s32.totalorder %s159, %s161
      %p168 = scmp.eq.s32.totalorder %s25, 1
      %p169 = por %p167, %p168
      %p170 = scmp.ne.s32.totalorder %s161, %s162
      %p171 = scmp.eq.s32.totalorder %s25, 0
      %p172 = por %p170, %p171
      %p173 = scmp.ne.s32.totalorder %s161, %s162
      %p174 = scmp.eq.s32.totalorder %s26, 1
      %p175 = por %p173, %p174
      %p177 = scmp.ne.s32.totalorder %s162, %s176
      %p178 = scmp.eq.s32.totalorder %s26, 0
      %p179 = por %p177, %p178
      %s181 = sadd.s32 %s180, 1
      %p184 = scmp.eq.s32.totalorder %s20, 1
      %p185 = scmp.ne.s32.totalorder %s180, %s182
      %p186 = scmp.eq.s32.totalorder %s20, 0
      %p187 = por %p185, %p186
      %p188 = scmp.ne.s32.totalorder %s180, %s182
      %p189 = scmp.eq.s32.totalorder %s25, 1
      %p190 = por %p188, %p189
      %p191 = scmp.ne.s32.totalorder %s182, %s183
      %p192 = scmp.eq.s32.totalorder %s25, 0
      %p193 = por %p191, %p192
      %p194 = scmp.ne.s32.totalorder %s182, %s183
      %p195 = scmp.eq.s32.totalorder %s26, 1
      %p196 = por %p194, %p195
      %p198 = scmp.ne.s32.totalorder %s183, %s197
      %p199 = scmp.eq.s32.totalorder %s26, 0
      %p200 = por %p198, %p199
      %s202 = sadd.s32 %s201, 1
      %p205 = scmp.eq.s32.totalorder %s20, 1
      %p206 = scmp.ne.s32.totalorder %s201, %s203
      %p207 = scmp.eq.s32.totalorder %s20, 0
      %p208 = por %p206, %p207
      %p209 = scmp.ne.s32.totalorder %s201, %s203
      %p210 = scmp.eq.s32.totalorder %s25, 1
      %p211 = por %p209, %p210
      %p212 = scmp.ne.s32.totalorder %s203, %s204
      %p213 = scmp.eq.s32.totalorder %s25, 0
      %p214 = por %p212, %p213
      %p215 = scmp.ne.s32.totalorder %s203, %s204
      %p216 = scmp.eq.s32.totalorder %s26, 1
      %p217 = por %p215, %p216
      %p219 = scmp.ne.s32.totalorder %s204, %s218
      %p220 = scmp.eq.s32.totalorder %s26, 0
      %p221 = por %p219, %p220
      %s223 = sadd.s32 %s222, 1
      %p226 = scmp.eq.s32.totalorder %s20, 1
      %p227 = scmp.ne.s32.totalorder %s222, %s224
      %p228 = scmp.eq.s32.totalorder %s20, 0
      %p229 = por %p227, %p228
      %p230 = scmp.ne.s32.totalorder %s222, %s224
      %p231 = scmp.eq.s32.totalorder %s25, 1
      %p232 = por %p230, %p231
      %p233 = scmp.ne.s32.totalorder %s224, %s225
      %p234 = scmp.eq.s32.totalorder %s25, 0
      %p235 = por %p233, %p234
      %p236 = scmp.ne.s32.totalorder %s224, %s225
      %p237 = scmp.eq.s32.totalorder %s26, 1
      %p238 = por %p236, %p237
      %p240 = scmp.ne.s32.totalorder %s225, %s239
      %p241 = scmp.eq.s32.totalorder %s26, 0
      %p242 = por %p240, %p241
      %s243 = ssub.s32 %s20, %s27
      %p244 = scmp.eq.s32.totalorder %s243, 0
      %s246 = sadd.s32 %s245, 1
      %s247 = scalar_select %p244, %s245, %s246
      %p250 = pneg %p244
      %p251 = scmp.eq.s32.totalorder %s20, 1
      %p252 = por %p250, %p251
      %p253 = scmp.ne.s32.totalorder %s245, %s248
      %p254 = scmp.eq.s32.totalorder %s20, 0
      %p255 = por %p253, %p254
      %p256 = scmp.ne.s32.totalorder %s245, %s248
      %p257 = scmp.eq.s32.totalorder %s25, 1
      %p258 = por %p256, %p257
      %p259 = scmp.ne.s32.totalorder %s248, %s249
      %p260 = scmp.eq.s32.totalorder %s25, 0
      %p261 = por %p259, %p260
      %p262 = scmp.ne.s32.totalorder %s248, %s249
      %p263 = scmp.eq.s32.totalorder %s26, 1
      %p264 = por %p262, %p263
      %p266 = scmp.ne.s32.totalorder %s249, %s265
      %p267 = scmp.eq.s32.totalorder %s26, 0
      %p268 = por %p266, %p267
      %p269 = scmp.le.s32.totalorder 1, %s20
      %p270 = scmp.lt.s32.totalorder %s20, 3
      %p271 = pnand %p269, %p270
      %p272 = pneg %p271
      // Predicated region
      $region9: #{tpu_custom_call.1} parent=5 // pred_check
        _
      $region10: #{tpu_custom_call.1} parent=5 // pred_check_branch
        %274 = sbr.rel (%p271) target = $region12
      $region11: #{tpu_custom_call.1} parent=5 // pred_region
        %s275 = ssub.s32 %s20, 1
        // Predicated region
        $region13: #{tpu_custom_call.1} parent=11 // pred_check
          %p276 = pneg %p67
        $region14: #{tpu_custom_call.1} parent=11 // pred_check_branch
          %278 = sbr.rel (%p276) target = $region16
        $region15: #{tpu_custom_call.1} parent=11 // pred_region
          _
        $region16: #{tpu_custom_call.1} parent=11 // pred_fallthru
          _
        // Predicated region
        $region17: #{tpu_custom_call.1} parent=11 // pred_check
          %p279 = pneg %p88
        $region18: #{tpu_custom_call.1} parent=11 // pred_check_branch
          %281 = sbr.rel (%p279) target = $region20
        $region19: #{tpu_custom_call.1} parent=11 // pred_region
          _
        $region20: #{tpu_custom_call.1} parent=11 // pred_fallthru
          _
        // Predicated region
        $region21: #{tpu_custom_call.1} parent=11 // pred_check
          %p282 = pneg %p109
        $region22: #{tpu_custom_call.1} parent=11 // pred_check_branch
          %284 = sbr.rel (%p282) target = $region24
        $region23: #{tpu_custom_call.1} parent=11 // pred_region
          _
        $region24: #{tpu_custom_call.1} parent=11 // pred_fallthru
          _
        // Predicated region
        $region25: #{tpu_custom_call.1} parent=11 // pred_check
          %p285 = pneg %p130
        $region26: #{tpu_custom_call.1} parent=11 // pred_check_branch
          %287 = sbr.rel (%p285) target = $region28
        $region27: #{tpu_custom_call.1} parent=11 // pred_region
          _
        $region28: #{tpu_custom_call.1} parent=11 // pred_fallthru
          _
        // Predicated region
        $region29: #{tpu_custom_call.1} parent=11 // pred_check
          %p288 = pneg %p151
        $region30: #{tpu_custom_call.1} parent=11 // pred_check_branch
          %290 = sbr.rel (%p288) target = $region32
        $region31: #{tpu_custom_call.1} parent=11 // pred_region
          _
        $region32: #{tpu_custom_call.1} parent=11 // pred_fallthru
          _
        // Predicated region
        $region33: #{tpu_custom_call.1} parent=11 // pred_check
          %p291 = pneg %p172
        $region34: #{tpu_custom_call.1} parent=11 // pred_check_branch
          %293 = sbr.rel (%p291) target = $region36
        $region35: #{tpu_custom_call.1} parent=11 // pred_region
          _
        $region36: #{tpu_custom_call.1} parent=11 // pred_fallthru
          _
        // Predicated region
        $region37: #{tpu_custom_call.1} parent=11 // pred_check
          %p294 = pneg %p193
        $region38: #{tpu_custom_call.1} parent=11 // pred_check_branch
          %296 = sbr.rel (%p294) target = $region40
        $region39: #{tpu_custom_call.1} parent=11 // pred_region
          _
        $region40: #{tpu_custom_call.1} parent=11 // pred_fallthru
          _
        // Predicated region
        $region41: #{tpu_custom_call.1} parent=11 // pred_check
          %p297 = pneg %p214
        $region42: #{tpu_custom_call.1} parent=11 // pred_check_branch
          %299 = sbr.rel (%p297) target = $region44
        $region43: #{tpu_custom_call.1} parent=11 // pred_region
          _
        $region44: #{tpu_custom_call.1} parent=11 // pred_fallthru
          _
        // Predicated region
        $region45: #{tpu_custom_call.1} parent=11 // pred_check
          %p300 = pneg %p235
        $region46: #{tpu_custom_call.1} parent=11 // pred_check_branch
          %302 = sbr.rel (%p300) target = $region48
        $region47: #{tpu_custom_call.1} parent=11 // pred_region
          _
        $region48: #{tpu_custom_call.1} parent=11 // pred_fallthru
          _
      $region12: #{tpu_custom_call.1} parent=5 // pred_fallthru
        _
      %p303 = scmp.lt.s32.totalorder %s20, 2
      // Predicated region
      $region49: #{tpu_custom_call.1} parent=5 // pred_check
        %p304 = pneg %p303
      $region50: #{tpu_custom_call.1} parent=5 // pred_check_branch
        %306 = sbr.rel (%p304) target = $region52
      $region51: #{tpu_custom_call.1} parent=5 // pred_region
        // Predicated region
        $region53: #{tpu_custom_call.1} parent=51 // pred_check
          %p307 = pneg %p40
        $region54: #{tpu_custom_call.1} parent=51 // pred_check_branch
          %309 = sbr.rel (%p307) target = $region56
        $region55: #{tpu_custom_call.1} parent=51 // pred_region
          %s310 = sand.u32 %s30, 1
          %s311 = sand.u32 %s30, 1
          %s312 = smul.addr %s311, 16
          %s313 = scalar_lea.vmem [#allocation3], %s312
          %s314 = smul.u32 2, %s20
          %s315 = smul.addr %s314, 4
          %s316 = scalar_lea.vmem %s0, %s315
          // Predicated region
          $region57: #{tpu_custom_call.1} parent=55 // pred_check
            _
          $region58: #{tpu_custom_call.1} parent=55 // pred_check_branch
            %318 = sbr.rel (0) target = $region60
          $region59: #{tpu_custom_call.1} parent=55 // pred_region
            // Predicated region
            $region61: #{tpu_custom_call.1} parent=59 // pred_check
              _
            $region62: #{tpu_custom_call.1} parent=59 // pred_check_branch
              %320 = sbr.rel (0) target = $region64
            $region63: #{tpu_custom_call.1} parent=59 // pred_region
              // Predicated region
              $region76: #{tpu_custom_call.1} parent=63 // pred_check
                _
              $region77: #{tpu_custom_call.1} parent=63 // pred_check_branch
                %338 = sbr.rel (0) target = $region79
              $region78: #{tpu_custom_call.1} parent=63 // pred_region
                loop: start=0, step=1, limit=1
                $region80: #{tpu_custom_call.1} parent=78 // loop_pre_header
                  _
                $region81: #{tpu_custom_call.1} parent=78 // loop_header
                  %s340 = sphi 0, %s344
                  %p341 = scmp.ge.s32.totalorder %s340, 1
                  %s345 = sphi %s316, %s316
                  %s346 = sphi %s313, %s313
                $region82: #{tpu_custom_call.1} parent=78 // loop_header_branch
                  %343 = sbr.rel (%p341) target = $region86
                $region83: #{tpu_custom_call.1} parent=78 // loop_body
                  %v347 = vld [vmem:[%s345] sm:$0xff]
                  %348 = vst [vmem:[%s346] sm:$0xff] %v347
                  %v349 = vld [vmem:[%s345 + $0x10] sm:$0xff]
                  %350 = vst [vmem:[%s346 + $0x8] sm:$0xff] %v349
                $region84: #{tpu_custom_call.1} parent=78 // loop_footer
                  %s344 = sadd.s32 1, %s340
                $region85: #{tpu_custom_call.1} parent=78 // loop_footer_branch
                  %339 = sbr.rel target = $region81
                $region86: #{tpu_custom_call.1} parent=78 // loop_exit
                  _
              $region79: #{tpu_custom_call.1} parent=63 // pred_fallthru
                _
              // Predicated region
              $region87: #{tpu_custom_call.1} parent=63 // pred_check
                _
              $region88: #{tpu_custom_call.1} parent=63 // pred_check_branch
                %352 = sbr.rel target = $region90
              $region89: #{tpu_custom_call.1} parent=63 // pred_region
                _
              $region90: #{tpu_custom_call.1} parent=63 // pred_fallthru
                _
            $region64: #{tpu_custom_call.1} parent=59 // pred_fallthru
              _
            // Predicated region
            $region65: #{tpu_custom_call.1} parent=59 // pred_check
              _
            $region66: #{tpu_custom_call.1} parent=59 // pred_check_branch
              %322 = sbr.rel target = $region68
            $region67: #{tpu_custom_call.1} parent=59 // pred_region
              %s324 = ssub.s32 256, 1
              loop: start=0, step=1, limit=1
              $region69: #{tpu_custom_call.1} parent=67 // loop_pre_header
                _
              $region70: #{tpu_custom_call.1} parent=67 // loop_header
                %s326 = sphi 0, %s330
                %p327 = scmp.ge.s32.totalorder %s326, 1
                %s331 = sphi %s316, %s316
                %s332 = sphi %s313, %s313
              $region71: #{tpu_custom_call.1} parent=67 // loop_header_branch
                %329 = sbr.rel (%p327) target = $region75
              $region72: #{tpu_custom_call.1} parent=67 // loop_body
                %v333 = vld [vmem:[%s331] sm:%s324]
                %334 = vst [vmem:[%s332] sm:%s324] %v333
                %v335 = vld [vmem:[%s331 + $0x10] sm:%s324]
                %336 = vst [vmem:[%s332 + $0x8] sm:%s324] %v335
              $region73: #{tpu_custom_call.1} parent=67 // loop_footer
                %s330 = sadd.s32 1, %s326
              $region74: #{tpu_custom_call.1} parent=67 // loop_footer_branch
                %325 = sbr.rel target = $region70
              $region75: #{tpu_custom_call.1} parent=67 // loop_exit
                _
            $region68: #{tpu_custom_call.1} parent=59 // pred_fallthru
              _
          $region60: #{tpu_custom_call.1} parent=55 // pred_fallthru
            _
          %353 = vnop
        $region56: #{tpu_custom_call.1} parent=51 // pred_fallthru
          _
      $region52: #{tpu_custom_call.1} parent=5 // pred_fallthru
        _
      %p354 = scmp.le.s32.totalorder 1, %s20
      %p355 = scmp.lt.s32.totalorder %s20, 3
      %p356 = pnand %p354, %p355
      %p357 = pneg %p356
      // Predicated region
      $region91: #{tpu_custom_call.1} parent=5 // pred_check
        _
      $region92: #{tpu_custom_call.1} parent=5 // pred_check_branch
        %359 = sbr.rel (%p356) target = $region94
      $region93: #{tpu_custom_call.1} parent=5 // pred_region
        %s360 = ssub.s32 %s20, 1
        %s361 = sand.u32 %s33, 1
        %s362 = sand.u32 %s33, 1
        %s363 = smul.addr %s362, 16
        %s364 = scalar_lea.vmem [#allocation3], %s363
        // Predicated region
        $region95: #{tpu_custom_call.1} parent=93 // pred_check
          %p365 = pneg %p46
        $region96: #{tpu_custom_call.1} parent=93 // pred_check_branch
          %367 = sbr.rel (%p365) target = $region98
        $region97: #{tpu_custom_call.1} parent=93 // pred_region
          _
        $region98: #{tpu_custom_call.1} parent=93 // pred_fallthru
          _
        %s368 = sand.u32 %s33, 1
        %s369 = sand.u32 %s33, 1
        %s370 = smul.addr %s369, 16
        %s371 = scalar_lea.vmem [#allocation3], %s370
        %p372 = pneg %p46
        %p373 = pneg %p43
        %p374 = pneg %p67
        %p375 = pneg %p64
        %p376 = pneg %p88
        %p377 = pneg %p85
        %p378 = pneg %p109
        %p379 = pneg %p106
        %p380 = pneg %p130
        %p381 = pneg %p127
        %p382 = pneg %p151
        %p383 = pneg %p148
        %p384 = pneg %p172
        %p385 = pneg %p169
        %p386 = pneg %p193
        %p387 = pneg %p190
        %p388 = pneg %p214
        %p389 = pneg %p211
        %p390 = pneg %p235
        %p391 = pneg %p232
        %p392 = pneg %p261
        %p393 = pneg %p258
        %s394 = sand.u32 %s248, 1
        %s395 = scalar_lea.sflag [#allocation5], %s394
        %s396 = sand.u32 %s248, 1
        %s397 = smul.addr %s396, 16
        %s398 = scalar_lea.vmem [#allocation4], %s397
        %s399 = smul.u32 2, %s25
        %s400 = smul.u32 2, %s25
        %v402 = vld [vmem:[%s364] sm:$0xff]
        %v403 = vld [vmem:[%s364 + $0x8] sm:$0xff]
        %v404 = vld [vmem:[%s1] ss:$4 sm:$0x3]
        %s405 = scalar_lea.vmem %s1, 1
        %v406 = vld [vmem:[%s405] ss:$4 sm:$0x3]
        %s407 = scalar_lea.vmem %s1, 2
        %v408 = vld [vmem:[%s407] ss:$4 sm:$0x3]
        %s409 = scalar_lea.vmem %s1, 3
        %v410 = vld [vmem:[%s409] ss:$4 sm:$0x3]
        %v411 = vld [vmem:[%s2] sm:$0xf]
        %v412 = vld [vmem:[%s2 + $0x4] sm:$0xf]
        %v413 = vld [vmem:[%s2 + $0x8] sm:$0xf]
        %v414 = vld [vmem:[%s2 + $0xc] sm:$0xf]
        %v415 = vld [vmem:[%s3] sm:$0xff]
        %v416 = vld [vmem:[%s3 + $0x8] sm:$0xff]
        %v417 = vld [vmem:[%s3 + $0x10] sm:$0xff]
        %v418 = vld [vmem:[%s3 + $0x18] sm:$0xff]
        %420 = vset.pattern.permute.xlu0 0
        %421 = vperm.xlu0 %420, %v415
        %v422 = vpop.permute.xlu0 %421
        %425 = vset.pattern.permute.xlu0 0
        %426 = vperm.xlu0 %425, %v416
        %v427 = vpop.permute.xlu0 %426
        %430 = vset.pattern.permute.xlu0 0
        %431 = vperm.xlu0 %430, %v417
        %v432 = vpop.permute.xlu0 %431
        %435 = vset.pattern.permute.xlu0 0
        %436 = vperm.xlu0 %435, %v418
        %v437 = vpop.permute.xlu0 %436
        %v443 = vunpack.c.l.b16 %v411
        %v444 = vunpack.c.l.b16 %v412
        %v445 = vunpack.c.l.b16 %v413
        %v446 = vunpack.c.l.b16 %v414
        %v447 = vpack.c.b16 %v444, %v443
        %v448 = vpack.c.b16 %v446, %v445
        %v451 = vunpack.c.l.b16 %v402
        %v452 = vunpack.c.h.b16 %v402
        %v453 = vunpack.c.l.b16 %v403
        %v454 = vunpack.c.h.b16 %v403
        %v455 = vpack.c.b16 %v453, %v451
        %v456 = vpack.c.b16 %v454, %v452
        %vm459 = vcmask 130048
        %v461 = vsel %vm459, %v447, 0
        %v464 = vsel %vm459, %v448, 0
        %466 = vmatpush.bf16.msra.mxu0 0
        %467 = vmatpush.bf16.msra.mxu0 0
        %468 = vmatpush.bf16.msra.mxu0 0
        %469 = vmatpush.bf16.msra.mxu0 0
        %470 = vmatpush.bf16.msra.mxu0 0
        %471 = vmatpush.bf16.msra.mxu0 0
        %472 = vmatpush.bf16.msra.mxu0 0
        %473 = vmatpush.bf16.msra.mxu0 %v455
        %474 = vmatmul.bf16.gmra.mxu0 %v461
        %v475 = vpop.f32.mrf.mxu0
        %v476 = vadd.f32 %v422, %v475
        %v477 = vpop.f32.mrf.mxu0
        %v478 = vadd.f32 %v427, %v477
        %479 = vmatmul.bf16.gmra.mxu0 %v464
        %v480 = vpop.f32.mrf.mxu0
        %v481 = vadd.f32 %v432, %v480
        %v482 = vpop.f32.mrf.mxu0
        %v483 = vadd.f32 %v437, %v482
        %484 = vdwg.mxu0
        %485 = vmatpush.bf16.msra.mxu0 0
        %486 = vmatpush.bf16.msra.mxu0 0
        %487 = vmatpush.bf16.msra.mxu0 0
        %488 = vmatpush.bf16.msra.mxu0 0
        %489 = vmatpush.bf16.msra.mxu0 0
        %490 = vmatpush.bf16.msra.mxu0 0
        %491 = vmatpush.bf16.msra.mxu0 0
        %492 = vmatpush.bf16.msra.mxu0 %v456
        %493 = vmatmul.bf16.gmra.mxu0 %v461
        %v494 = vpop.f32.mrf.mxu0
        %v495 = vadd.f32 %v422, %v494
        %v496 = vpop.f32.mrf.mxu0
        %v497 = vadd.f32 %v427, %v496
        %498 = vmatmul.bf16.gmra.mxu0 %v464
        %v499 = vpop.f32.mrf.mxu0
        %v500 = vadd.f32 %v432, %v499
        %v501 = vpop.f32.mrf.mxu0
        %v502 = vadd.f32 %v437, %v501
        %503 = vdwg.mxu0
        %v504 = vmax.f32 %v476, 0.0
        %v505 = vmax.f32 %v495, 0.0
        %v506 = vmax.f32 %v478, 0.0
        %v507 = vmax.f32 %v497, 0.0
        %v508 = vmax.f32 %v481, 0.0
        %v509 = vmax.f32 %v500, 0.0
        %v510 = vmax.f32 %v483, 0.0
        %v511 = vmax.f32 %v502, 0.0
        %v512 = vld [vmem:[%s4] sm:$0xf]
        %v513 = vpack.c.bf16 %v506, %v504
        %v514 = vpack.c.bf16 %v507, %v505
        %v515 = vpack.c.bf16 %v510, %v508
        %v516 = vpack.c.bf16 %v511, %v509
        %v517 = vld [vmem:[%s5] sm:$0xff]
        %519 = vset.pattern.permute.xlu0 0
        %520 = vperm.xlu0 %519, %v517
        %v521 = vpop.permute.xlu0 %520
        %vm523 = vcmask 261120
        %v525 = vsel %vm523, %v512, 0
        %527 = vmatpush.bf16.msra.mxu0 0
        %528 = vmatpush.bf16.msra.mxu0 0
        %529 = vmatpush.bf16.msra.mxu0 0
        %530 = vmatpush.bf16.msra.mxu0 0
        %531 = vmatpush.bf16.msra.mxu0 0
        %532 = vmatpush.bf16.msra.mxu0 0
        %533 = vmatpush.bf16.msra.mxu0 %v515
        %534 = vmatpush.bf16.msra.mxu0 %v513
        %535 = vmatmul.bf16.gmra.mxu0 %v525
        %v536 = vpop.f32.mrf.mxu0
        %v537 = vadd.f32 %v521, %v536
        %v538 = vpop.f32.mrf.mxu0
        %539 = vdwg.mxu0
        %540 = vmatpush.bf16.msra.mxu0 0
        %541 = vmatpush.bf16.msra.mxu0 0
        %542 = vmatpush.bf16.msra.mxu0 0
        %543 = vmatpush.bf16.msra.mxu0 0
        %544 = vmatpush.bf16.msra.mxu0 0
        %545 = vmatpush.bf16.msra.mxu0 0
        %546 = vmatpush.bf16.msra.mxu0 %v516
        %547 = vmatpush.bf16.msra.mxu0 %v514
        %548 = vmatmul.bf16.gmra.mxu0 %v525
        %v549 = vpop.f32.mrf.mxu0
        %v550 = vadd.f32 %v521, %v549
        %v551 = vpop.f32.mrf.mxu0
        %552 = vdwg.mxu0
        %553 = vrot.lane.b32.xlu0 %v537, 1
        %v554 = vpop.permute.xlu0 %553
        %555 = vrot.lane.b32.xlu0 %v550, 1
        %v556 = vpop.permute.xlu0 %555
        %v557 = vlaneseq
        %v558 = vand.u32 %v557, 127
        %vm559 = vcmp.lt.s32.totalorder %v558, 1
        %v560 = vsel %vm559, %v554, %v556
        %v561 = vsel %vm559, %v556, %v554
        %v563 = vperm.slane %v404, 0
        %v564 = vperm.slane %v404, 1
        %v567 = vmul.f32 %v561, %v563
        %v568 = vmul.f32 %v560, %v564
        %569 = vrot.lane.b32.xlu0 %v537, 127
        %v570 = vpop.permute.xlu0 %569
        %571 = vrot.lane.b32.xlu0 %v550, 127
        %v572 = vpop.permute.xlu0 %571
        %vm573 = vcmp.lt.s32.totalorder %v558, 127
        %v574 = vsel %vm573, %v570, %v572
        %v575 = vsel %vm573, %v572, %v570
        %v577 = vperm.slane %v406, 0
        %v578 = vperm.slane %v406, 1
        %v581 = vmul.f32 %v574, %v577
        %v582 = vmul.f32 %v575, %v578
        %583 = vrot.lane.b32.xlu0 %v567, 16
        %v584 = vpop.permute.xlu0 %583
        %585 = vrot.lane.b32.xlu0 %v568, 16
        %v586 = vpop.permute.xlu0 %585
        %vm587 = vcmp.lt.s32.totalorder %v558, 16
        %v588 = vsel %vm587, %v584, %v586
        %v589 = vsel %vm587, %v586, %v584
        %v591 = vperm.slane %v408, 0
        %v592 = vperm.slane %v408, 1
        %v595 = vmul.f32 %v589, %v591
        %v596 = vmul.f32 %v588, %v592
        %597 = vrot.lane.b32.xlu0 %v567, 112
        %v598 = vpop.permute.xlu0 %597
        %599 = vrot.lane.b32.xlu0 %v568, 112
        %v600 = vpop.permute.xlu0 %599
        %vm601 = vcmp.lt.s32.totalorder %v558, 112
        %v602 = vsel %vm601, %v598, %v600
        %v603 = vsel %vm601, %v600, %v598
        %v605 = vperm.slane %v410, 0
        %v606 = vperm.slane %v410, 1
        %v609 = vmul.f32 %v602, %v605
        %v610 = vmul.f32 %v603, %v606
        %611 = vrot.lane.b32.xlu0 %v537, 16
        %v612 = vpop.permute.xlu0 %611
        %613 = vrot.lane.b32.xlu0 %v550, 16
        %v614 = vpop.permute.xlu0 %613
        %v615 = vsel %vm587, %v612, %v614
        %v616 = vsel %vm587, %v614, %v612
        %v617 = vmul.f32 %v616, %v591
        %v618 = vmul.f32 %v615, %v592
        %619 = vrot.lane.b32.xlu0 %v537, 112
        %v620 = vpop.permute.xlu0 %619
        %621 = vrot.lane.b32.xlu0 %v550, 112
        %v622 = vpop.permute.xlu0 %621
        %v623 = vsel %vm601, %v620, %v622
        %v624 = vsel %vm601, %v622, %v620
        %v625 = vmul.f32 %v623, %v605
        %v626 = vmul.f32 %v624, %v606
        %627 = vrot.lane.b32.xlu0 %v581, 16
        %v628 = vpop.permute.xlu0 %627
        %629 = vrot.lane.b32.xlu0 %v582, 16
        %v630 = vpop.permute.xlu0 %629
        %v631 = vsel %vm587, %v628, %v630
        %v632 = vsel %vm587, %v630, %v628
        %v633 = vmul.f32 %v632, %v591
        %v634 = vmul.f32 %v631, %v592
        %635 = vrot.lane.b32.xlu0 %v581, 112
        %v636 = vpop.permute.xlu0 %635
        %637 = vrot.lane.b32.xlu0 %v582, 112
        %v638 = vpop.permute.xlu0 %637
        %v639 = vsel %vm601, %v636, %v638
        %v640 = vsel %vm601, %v638, %v636
        %v641 = vmul.f32 %v639, %v605
        %v642 = vmul.f32 %v640, %v606
        %v643 = vunpack.c.l.bf16 %v402
        %v644 = vunpack.c.h.bf16 %v402
        %v645 = vunpack.c.l.bf16 %v403
        %v646 = vunpack.c.h.bf16 %v403
        %647 = vrot.lane.b32.xlu0 %v643, 1
        %v648 = vpop.permute.xlu0 %647
        %649 = vrot.lane.b32.xlu0 %v645, 1
        %v650 = vpop.permute.xlu0 %649
        %651 = vrot.lane.b32.xlu0 %v644, 1
        %v652 = vpop.permute.xlu0 %651
        %653 = vrot.lane.b32.xlu0 %v646, 1
        %v654 = vpop.permute.xlu0 %653
        %v655 = vsel %vm559, %v648, %v652
        %v656 = vsel %vm559, %v650, %v654
        %v657 = vsel %vm559, %v652, %v648
        %v658 = vsel %vm559, %v654, %v650
        %v659 = vmul.f32 %v657, %v563
        %v660 = vmul.f32 %v655, %v564
        %v661 = vmul.f32 %v658, %v563
        %v662 = vmul.f32 %v656, %v564
        %663 = vrot.lane.b32.xlu0 %v643, 127
        %v664 = vpop.permute.xlu0 %663
        %665 = vrot.lane.b32.xlu0 %v645, 127
        %v666 = vpop.permute.xlu0 %665
        %667 = vrot.lane.b32.xlu0 %v644, 127
        %v668 = vpop.permute.xlu0 %667
        %669 = vrot.lane.b32.xlu0 %v646, 127
        %v670 = vpop.permute.xlu0 %669
        %v671 = vsel %vm573, %v664, %v668
        %v672 = vsel %vm573, %v666, %v670
        %v673 = vsel %vm573, %v668, %v664
        %v674 = vsel %vm573, %v670, %v666
        %v675 = vmul.f32 %v671, %v577
        %v676 = vmul.f32 %v673, %v578
        %v677 = vmul.f32 %v672, %v577
        %v678 = vmul.f32 %v674, %v578
        %679 = vrot.lane.b32.xlu0 %v659, 16
        %v680 = vpop.permute.xlu0 %679
        %681 = vrot.lane.b32.xlu0 %v661, 16
        %v682 = vpop.permute.xlu0 %681
        %683 = vrot.lane.b32.xlu0 %v660, 16
        %v684 = vpop.permute.xlu0 %683
        %685 = vrot.lane.b32.xlu0 %v662, 16
        %v686 = vpop.permute.xlu0 %685
        %v687 = vsel %vm587, %v680, %v684
        %v688 = vsel %vm587, %v682, %v686
        %v689 = vsel %vm587, %v684, %v680
        %v690 = vsel %vm587, %v686, %v682
        %v691 = vmul.f32 %v689, %v591
        %v692 = vmul.f32 %v687, %v592
        %v693 = vmul.f32 %v690, %v591
        %v694 = vmul.f32 %v688, %v592
        %695 = vrot.lane.b32.xlu0 %v659, 112
        %v696 = vpop.permute.xlu0 %695
        %697 = vrot.lane.b32.xlu0 %v661, 112
        %v698 = vpop.permute.xlu0 %697
        %699 = vrot.lane.b32.xlu0 %v660, 112
        %v700 = vpop.permute.xlu0 %699
        %701 = vrot.lane.b32.xlu0 %v662, 112
        %v702 = vpop.permute.xlu0 %701
        %v703 = vsel %vm601, %v696, %v700
        %v704 = vsel %vm601, %v698, %v702
        %v705 = vsel %vm601, %v700, %v696
        %v706 = vsel %vm601, %v702, %v698
        %v707 = vmul.f32 %v703, %v605
        %v708 = vmul.f32 %v705, %v606
        %v709 = vmul.f32 %v704, %v605
        %v710 = vmul.f32 %v706, %v606
        %711 = vrot.lane.b32.xlu0 %v643, 16
        %v712 = vpop.permute.xlu0 %711
        %713 = vrot.lane.b32.xlu0 %v645, 16
        %v714 = vpop.permute.xlu0 %713
        %715 = vrot.lane.b32.xlu0 %v644, 16
        %v716 = vpop.permute.xlu0 %715
        %717 = vrot.lane.b32.xlu0 %v646, 16
        %v718 = vpop.permute.xlu0 %717
        %v719 = vsel %vm587, %v712, %v716
        %v720 = vsel %vm587, %v714, %v718
        %v721 = vsel %vm587, %v716, %v712
        %v722 = vsel %vm587, %v718, %v714
        %v723 = vmul.f32 %v721, %v591
        %v724 = vmul.f32 %v719, %v592
        %v725 = vmul.f32 %v722, %v591
        %v726 = vmul.f32 %v720, %v592
        %727 = vrot.lane.b32.xlu0 %v643, 112
        %v728 = vpop.permute.xlu0 %727
        %729 = vrot.lane.b32.xlu0 %v645, 112
        %v730 = vpop.permute.xlu0 %729
        %731 = vrot.lane.b32.xlu0 %v644, 112
        %v732 = vpop.permute.xlu0 %731
        %733 = vrot.lane.b32.xlu0 %v646, 112
        %v734 = vpop.permute.xlu0 %733
        %v735 = vsel %vm601, %v728, %v732
        %v736 = vsel %vm601, %v730, %v734
        %v737 = vsel %vm601, %v732, %v728
        %v738 = vsel %vm601, %v734, %v730
        %v739 = vmul.f32 %v735, %v605
        %v740 = vmul.f32 %v737, %v606
        %v741 = vmul.f32 %v736, %v605
        %v742 = vmul.f32 %v738, %v606
        %743 = vrot.lane.b32.xlu0 %v675, 16
        %v744 = vpop.permute.xlu0 %743
        %745 = vrot.lane.b32.xlu0 %v677, 16
        %v746 = vpop.permute.xlu0 %745
        %747 = vrot.lane.b32.xlu0 %v676, 16
        %v748 = vpop.permute.xlu0 %747
        %749 = vrot.lane.b32.xlu0 %v678, 16
        %v750 = vpop.permute.xlu0 %749
        %v751 = vsel %vm587, %v744, %v748
        %v752 = vsel %vm587, %v746, %v750
        %v753 = vsel %vm587, %v748, %v744
        %v754 = vsel %vm587, %v750, %v746
        %v755 = vmul.f32 %v753, %v591
        %v756 = vmul.f32 %v751, %v592
        %v757 = vmul.f32 %v754, %v591
        %v758 = vmul.f32 %v752, %v592
        %759 = vrot.lane.b32.xlu0 %v675, 112
        %v760 = vpop.permute.xlu0 %759
        %761 = vrot.lane.b32.xlu0 %v677, 112
        %v762 = vpop.permute.xlu0 %761
        %763 = vrot.lane.b32.xlu0 %v676, 112
        %v764 = vpop.permute.xlu0 %763
        %765 = vrot.lane.b32.xlu0 %v678, 112
        %v766 = vpop.permute.xlu0 %765
        %v767 = vsel %vm601, %v760, %v764
        %v768 = vsel %vm601, %v762, %v766
        %v769 = vsel %vm601, %v764, %v760
        %v770 = vsel %vm601, %v766, %v762
        %v771 = vmul.f32 %v767, %v605
        %v772 = vmul.f32 %v769, %v606
        %v773 = vmul.f32 %v768, %v605
        %v774 = vmul.f32 %v770, %v606
        %v775 = vld [vmem:[%s6] sm:$0xff]
        %v776 = vld [vmem:[%s6 + $0x8] sm:$0xff]
        %v777 = vpack.c.bf16 %v567, %v595
        %v778 = vpack.c.bf16 %v568, %v596
        %v779 = vpack.c.bf16 %v617, %v609
        %v780 = vpack.c.bf16 %v618, %v610
        %v781 = vpack.c.bf16 %v625, %v537
        %v782 = vpack.c.bf16 %v626, %v550
        %v783 = vpack.c.bf16 %v581, %v633
        %v784 = vpack.c.bf16 %v582, %v634
        %v785 = vpack.c.bf16 %v691, %v641
        %v786 = vpack.c.bf16 %v692, %v642
        %v787 = vpack.c.bf16 %v659, %v693
        %v788 = vpack.c.bf16 %v660, %v694
        %v789 = vpack.c.bf16 %v707, %v661
        %v790 = vpack.c.bf16 %v708, %v662
        %v791 = vpack.c.bf16 %v723, %v709
        %v792 = vpack.c.bf16 %v724, %v710
        %v793 = vpack.c.bf16 %v643, %v725
        %v794 = vpack.c.bf16 %v644, %v726
        %v795 = vpack.c.bf16 %v739, %v645
        %v796 = vpack.c.bf16 %v740, %v646
        %v797 = vpack.c.bf16 %v755, %v741
        %v798 = vpack.c.bf16 %v756, %v742
        %v799 = vpack.c.bf16 %v675, %v757
        %v800 = vpack.c.bf16 %v676, %v758
        %v801 = vpack.c.bf16 %v771, %v677
        %v802 = vpack.c.bf16 %v772, %v678
        %v803 = vpack.c.bf16 %v773, %v773
        %v804 = vpack.c.bf16 %v774, %v774
        %v805 = vld [vmem:[%s7] sm:$0xff]
        %v806 = vld [vmem:[%s7 + $0x8] sm:$0xff]
        %808 = vset.pattern.permute.xlu0 0
        %809 = vperm.xlu0 %808, %v805
        %v810 = vpop.permute.xlu0 %809
        %813 = vset.pattern.permute.xlu0 0
        %814 = vperm.xlu0 %813, %v806
        %v815 = vpop.permute.xlu0 %814
        %v819 = vunpack.c.l.b16 %v775
        %v820 = vunpack.c.h.b16 %v775
        %v821 = vunpack.c.l.b16 %v776
        %v822 = vunpack.c.h.b16 %v776
        %v823 = vpack.c.b16 %v821, %v819
        %v824 = vpack.c.b16 %v822, %v820
        %vm826 = vcmask 719872
        %v828 = vsel %vm826, %v824, 0
        %vm830 = vcmask 1043456
        %v832 = vsel %vm830, %v803, 0
        %v835 = vsel %vm830, %v804, 0
        %837 = vmatpush.bf16.msra.mxu0 %v791
        %838 = vmatpush.bf16.msra.mxu0 %v789
        %839 = vmatpush.bf16.msra.mxu0 %v787
        %840 = vmatpush.bf16.msra.mxu0 %v785
        %841 = vmatpush.bf16.msra.mxu0 %v783
        %842 = vmatpush.bf16.msra.mxu0 %v781
        %843 = vmatpush.bf16.msra.mxu0 %v779
        %844 = vmatpush.bf16.msra.mxu0 %v777
        %845 = vmatmul.bf16.gmra.mxu0 %v823
        %v846 = vpop.f32.mrf.mxu0
        %v847 = vadd.f32 %v810, %v846
        %v848 = vpop.f32.mrf.mxu0
        %v849 = vadd.f32 %v815, %v848
        %850 = vdwg.mxu0
        %851 = vmatpush.bf16.msra.mxu0 0
        %852 = vmatpush.bf16.msra.mxu0 0
        %853 = vmatpush.bf16.msra.mxu0 %v832
        %854 = vmatpush.bf16.msra.mxu0 %v801
        %855 = vmatpush.bf16.msra.mxu0 %v799
        %856 = vmatpush.bf16.msra.mxu0 %v797
        %857 = vmatpush.bf16.msra.mxu0 %v795
        %858 = vmatpush.bf16.msra.mxu0 %v793
        %859 = vmatmul.bf16.gmra.mxu0 %v828
        %v860 = vpop.f32.mrf.mxu0
        %v861 = vadd.f32 %v847, %v860
        %v862 = vpop.f32.mrf.mxu0
        %v863 = vadd.f32 %v849, %v862
        %864 = vdwg.mxu0
        %865 = vmatpush.bf16.msra.mxu0 %v792
        %866 = vmatpush.bf16.msra.mxu0 %v790
        %867 = vmatpush.bf16.msra.mxu0 %v788
        %868 = vmatpush.bf16.msra.mxu0 %v786
        %869 = vmatpush.bf16.msra.mxu0 %v784
        %870 = vmatpush.bf16.msra.mxu0 %v782
        %871 = vmatpush.bf16.msra.mxu0 %v780
        %872 = vmatpush.bf16.msra.mxu0 %v778
        %873 = vmatmul.bf16.gmra.mxu0 %v823
        %v874 = vpop.f32.mrf.mxu0
        %v875 = vadd.f32 %v810, %v874
        %v876 = vpop.f32.mrf.mxu0
        %v877 = vadd.f32 %v815, %v876
        %878 = vdwg.mxu0
        %879 = vmatpush.bf16.msra.mxu0 0
        %880 = vmatpush.bf16.msra.mxu0 0
        %881 = vmatpush.bf16.msra.mxu0 %v835
        %882 = vmatpush.bf16.msra.mxu0 %v802
        %883 = vmatpush.bf16.msra.mxu0 %v800
        %884 = vmatpush.bf16.msra.mxu0 %v798
        %885 = vmatpush.bf16.msra.mxu0 %v796
        %886 = vmatpush.bf16.msra.mxu0 %v794
        %887 = vmatmul.bf16.gmra.mxu0 %v828
        %v888 = vpop.f32.mrf.mxu0
        %v889 = vadd.f32 %v875, %v888
        %v890 = vpop.f32.mrf.mxu0
        %v891 = vadd.f32 %v877, %v890
        %892 = vdwg.mxu0
        %v893 = vadd.f32 %v861, %v889
        %894 = vadd.xlane.f32.xlu0 %v893
        %v895 = vpop.xlane.xlu0 %894
        %v896 = vrcp.pop 256.0
        %v897 = vmul.f32 256.0, %v896
        %v898 = vsub.f32 1.0, %v897
        %v899 = vmul.f32 %v896, %v898
        %v900 = vadd.f32 %v896, %v899
        %vm901 = vweird.f32 %v896
        %v902 = vsel %vm901, %v896, %v900
        %v903 = vmul.f32 %v895, %v902
        %v904 = vsub.f32 %v861, %v903
        %v905 = vsub.f32 %v889, %v903
        %v906 = vmul.f32 %v904, %v904
        %v907 = vmul.f32 %v905, %v905
        %v908 = vadd.f32 %v906, %v907
        %909 = vadd.xlane.f32.xlu0 %v908
        %v910 = vpop.xlane.xlu0 %909
        %v911 = vmul.f32 %v910, %v902
        %v912 = vld [vmem:[%s8] sm:$0xff]
        %914 = vset.pattern.permute.xlu0 4
        %915 = vperm.xlu0 %914, %v912
        %v916 = vpop.permute.xlu0 %915
        %v918 = vmul.f32 %v916, %v904
        %v919 = vmul.f32 %v916, %v905
        %v920 = vadd.f32 %v911, 1e-05
        %v921 = vrsqrt.pop %v920
        %v922 = vmul.f32 %v921, %v920
        %v923 = vmul.f32 %v922, %v921
        %v924 = vmul.f32 0.5, %v923
        %v925 = vsub.f32 1.5, %v924
        %v926 = vmul.f32 %v921, %v925
        %vm927 = vweird.f32 %v920
        %vm928 = vweird.f32 %v921
        %vm929 = vmor %vm927, %vm928
        %v930 = vsel %vm929, %v921, %v926
        %v931 = vmul.f32 %v918, %v930
        %v932 = vmul.f32 %v919, %v930
        %933 = vset.pattern.permute.xlu0 5
        %934 = vperm.xlu0 %933, %v912
        %v935 = vpop.permute.xlu0 %934
        %v937 = vadd.f32 %v931, %v935
        %v938 = vadd.f32 %v932, %v935
        %vm939 = vcmp.gt.f32.partialorder %v912, 0.5
        %v940 = vmul.f32 %v912, %v903
        %941 = vrot.lane.b32.xlu0 %v912, 127
        %v942 = vpop.permute.xlu0 %941
        %v944 = vadd.f32 %v940, %v942
        %945 = vset.pattern.permute.xlu0 2
        %946 = vperm.xlu0 %945, %v912
        %v947 = vpop.permute.xlu0 %946
        %v949 = vmul.f32 %v947, %v937
        %v950 = vmul.f32 %v947, %v938
        %951 = vset.pattern.permute.xlu0 3
        %952 = vperm.xlu0 %951, %v912
        %v953 = vpop.permute.xlu0 %952
        %v955 = vadd.f32 %v949, %v953
        %v956 = vadd.f32 %v950, %v953
        %v957 = vsel %vm939, 1, 0
        %958 = vset.pattern.permute.xlu0 6
        %959 = vperm.xlu0 %958, %v957
        %v960 = vpop.permute.xlu0 %959
        %vm961 = vcmp.eq.s32.totalorder %v960, 1
        %963 = vset.pattern.permute.xlu0 0
        %964 = vperm.xlu0 %963, %v944
        %v965 = vpop.permute.xlu0 %964
        %v967 = vsel %vm961, %v965, %v955
        %v968 = vsel %vm961, %v965, %v956
        %v969 = vxor.u32 %v967, 2147483648
        %v970 = vxor.u32 %v968, 2147483648
        %v971 = vmul.f32 %v969, 1.442695
        %v972 = vpow.pop %v971
        %v973 = vmul.f32 %v970, 1.442695
        %v974 = vpow.pop %v973
        %v975 = vadd.f32 %v972, 1.0
        %v976 = vadd.f32 %v974, 1.0
        %v977 = vrcp.pop %v975
        %v978 = vmul.f32 %v975, %v977
        %v979 = vsub.f32 1.0, %v978
        %v980 = vmul.f32 %v977, %v979
        %v981 = vadd.f32 %v977, %v980
        %vm982 = vweird.f32 %v975
        %vm983 = vweird.f32 %v977
        %vm984 = vmor %vm982, %vm983
        %v985 = vsel %vm984, %v977, %v981
        %v986 = vand.u32 2147483647, %v975
        %vm987 = vcmp.eq.f32.partialorder %v986, 8.507059e+37
        %v988 = vand.u32 %v975, 2147483648
        %v989 = vor.u32 1.1754944e-38, %v988
        %v990 = vsel %vm987, %v989, %v985
        %v991 = vmul.f32 1.0, %v990
        %v992 = vrcp.pop %v976
        %v993 = vmul.f32 %v976, %v992
        %v994 = vsub.f32 1.0, %v993
        %v995 = vmul.f32 %v992, %v994
        %v996 = vadd.f32 %v992, %v995
        %vm997 = vweird.f32 %v976
        %vm998 = vweird.f32 %v992
        %vm999 = vmor %vm997, %vm998
        %v1000 = vsel %vm999, %v992, %v996
        %v1001 = vand.u32 2147483647, %v976
        %vm1002 = vcmp.eq.f32.partialorder %v1001, 8.507059e+37
        %v1003 = vand.u32 %v976, 2147483648
        %v1004 = vor.u32 1.1754944e-38, %v1003
        %v1005 = vsel %vm1002, %v1004, %v1000
        %v1006 = vmul.f32 1.0, %v1005
        %v1007 = vmul.f32 %v861, %v991
        %v1008 = vmul.f32 %v889, %v1006
        %s1009 = sld [smem:[#allocation2]]
        %v1010 = vstv %s1009
        %v1011 = vmul.f32 %v1010, %v1007
        %v1012 = vmul.f32 %v1010, %v1008
        %v1013 = vadd.f32 %v1011, %v863
        %v1014 = vadd.f32 %v1012, %v891
        %1015 = vst [vmem:[%s398] sm:$0xff] %v1013
        %1016 = vst [vmem:[%s398 + $0x8] sm:$0xff] %v1014
        %s1017 = sand.u32 %s248, 1
        %s1018 = scalar_lea.sflag [#allocation5], %s1017
        %s1019 = sand.u32 %s248, 1
        %s1020 = smul.addr %s1019, 16
        %s1021 = scalar_lea.vmem [#allocation4], %s1020
        // Predicated region
        $region99: #{tpu_custom_call.1} parent=93 // pred_check
          %p1022 = pneg %p258
        $region100: #{tpu_custom_call.1} parent=93 // pred_check_branch
          %1024 = sbr.rel (%p1022) target = $region102
        $region101: #{tpu_custom_call.1} parent=93 // pred_region
          %s1025 = smul.u32 2, %s25
          %1027 = vsyncadd %s1018, 0
          %s1028 = smul.addr %s1025, 8
          %s1029 = scalar_lea.hbm %s10, %s1028
          %s1031 = sshll.u32 %s1021, 4
          %s1032 = int_to_ptr.vmem [resolvable:$true] %s1031
          %s1033 = sshll.u32 %s1029, 4
          %s1034 = int_to_ptr.hbm [resolvable:$true] %s1033
          %1036 = dma.vmem_to_hbm [thread:$0]  %s1032, 256, %s1034, %s1018
        $region102: #{tpu_custom_call.1} parent=93 // pred_fallthru
          _
      $region94: #{tpu_custom_call.1} parent=5 // pred_fallthru
        _
      %p1037 = scmp.le.s32.totalorder 2, %s20
      // Predicated region
      $region103: #{tpu_custom_call.1} parent=5 // pred_check
        %p1038 = pneg %p1037
      $region104: #{tpu_custom_call.1} parent=5 // pred_check_branch
        %1040 = sbr.rel (%p1038) target = $region106
      $region105: #{tpu_custom_call.1} parent=5 // pred_region
        %s1041 = ssub.s32 %s20, 2
        // Predicated region
        $region107: #{tpu_custom_call.1} parent=105 // pred_check
          %p1042 = pneg %p264
        $region108: #{tpu_custom_call.1} parent=105 // pred_check_branch
          %1044 = sbr.rel (%p1042) target = $region110
        $region109: #{tpu_custom_call.1} parent=105 // pred_region
          %s1045 = sand.u32 %s249, 1
          %s1046 = scalar_lea.sflag [#allocation5], %s1045
          %s1047 = sand.u32 %s249, 1
          %s1048 = smul.addr %s1047, 16
          %s1049 = scalar_lea.vmem [#allocation4], %s1048
          %1051 = dma.done %s1046, 256
        $region110: #{tpu_custom_call.1} parent=105 // pred_fallthru
          _
      $region106: #{tpu_custom_call.1} parent=5 // pred_fallthru
        _
    $region6: #{tpu_custom_call.1} parent=1 // loop_footer
      %s24 = sadd.s32 1, %s20
    $region7: #{tpu_custom_call.1} parent=1 // loop_footer_branch
      %19 = sbr.rel target = $region3
    $region8: #{tpu_custom_call.1} parent=1 // loop_exit
      _
    %1052 = vsyncpa [#allocation5], 1
    %s1053 = scalar_lea.sflag [#allocation5], 1
    %1054 = vsyncpa %s1053, 1

</llo_original>
